<compile_context>
chip_gen: v6e
topology: v6e:2x2x1
jax: 0.10.0
libtpu: 0.0.40
codegen_flags: <defaults>
</compile_context>

<pallas_src>
import jax
import jax.numpy as jnp
from jax.experimental import pallas as pl
from jax.experimental.pallas import tpu as pltpu


# ---------------------------------------------------------------------------
# Kernels
# ---------------------------------------------------------------------------

def _masked_softmax(logits, lens, T):
    """Masked, per-row-stabilized softmax shared by both kernels.

    Per-row max over *valid* positions is mathematically identical to the
    module's global max (the masked normalization is shift-invariant per row)
    but avoids underflow when a padded logit dominates, and never produces
    NaN for zero-length rows (those rows get all-zero attention).
    """
    bB = logits.shape[0]
    idx = jax.lax.broadcasted_iota(jnp.int32, (bB, T), 1)
    valid = idx < lens                                              # (bB, T)
    neg_inf = jnp.float32(-jnp.inf)
    masked_logits = jnp.where(valid, logits, neg_inf)
    m = jnp.max(masked_logits, axis=-1, keepdims=True)              # (bB, 1)
    m = jnp.where(m == neg_inf, jnp.float32(0.0), m)                # empty rows
    masked = jnp.exp(masked_logits - m)                             # exp(-inf)=0
    att_sums = jnp.sum(masked, axis=-1, keepdims=True)              # (bB, 1)
    return masked / jnp.maximum(att_sums, jnp.float32(1e-30))       # (bB, T)


def attention2_kernel_2d(x_ref, wlog_ref, expand_ref, reduce_ref, len_ref,
                         rep_ref, att_ref, w_ref):
    """Lane-dense path for H % 128 != 0.

    The dominant (bB, T*H) load and store use full 128-lane vregs; the
    per-timestep structure is recovered with tiny constant kron matrices on
    the MXU (which has plenty of slack in this HBM-bound kernel).
    """
    x = x_ref[...].astype(jnp.float32)                              # (bB, T*H)
    lens = len_ref[...]                                             # (bB, 1) i32
    T = att_ref.shape[-1]

    # logits[b, t] = <x[b, t, :], v>  via one MXU matmul against kron(I_T, v).
    logits = jnp.dot(x, wlog_ref[...], preferred_element_type=jnp.float32)

    attentions = _masked_softmax(logits, lens, T)                   # (bB, T)

    # Broadcast attentions[b, t] across the H lanes of timestep t.
    att_expanded = jnp.dot(attentions, expand_ref[...],
                           preferred_element_type=jnp.float32)      # (bB, T*H)
    weighted = x * att_expanded                                     # (bB, T*H)

    # representations[b, h] = sum_t weighted[b, t, h]  (segment sum over T).
    rep_ref[...] = jnp.dot(weighted, reduce_ref[...],
                           preferred_element_type=jnp.float32)      # (bB, H)
    att_ref[...] = attentions
    w_ref[...] = weighted.astype(w_ref.dtype)


def attention2_kernel_3d(x_ref, v_ref, len_ref, rep_ref, att_ref, w_ref):
    """Plain path (already lane-dense when H % 128 == 0)."""
    x = x_ref[...].astype(jnp.float32)                              # (bB, T, H)
    v = v_ref[...]                                                  # (1, H) f32
    lens = len_ref[...]                                             # (bB, 1) i32
    bB, T, H = x.shape

    logits = jnp.sum(x * v.reshape(1, 1, H), axis=-1)               # (bB, T)
    attentions = _masked_softmax(logits, lens, T)                   # (bB, T)

    weighted = x * attentions[:, :, None]                           # (bB, T, H)
    # Reuse the already-materialized `weighted` (sublane reduce on the XLU,
    # which has slack) instead of a q=1 batched einsum through the MXU FIFO.
    rep_ref[...] = jnp.sum(weighted, axis=1)                        # (bB, H)
    att_ref[...] = attentions
    w_ref[...] = weighted.astype(w_ref.dtype)


# ---------------------------------------------------------------------------
# Wrapper
# ---------------------------------------------------------------------------

def _round_up(x, m):
    return ((x + m - 1) // m) * m


def _tpu_budgets():
    """(block_budget_bytes, vmem_limit_bytes_or_None, buffer_count) per gen."""
    kind = ""
    try:
        kind = jax.devices()[0].device_kind.lower()
    except Exception:
        pass
    if "v7" in kind or "7x" in kind:
        # 64 MiB VMEM / TC: modest blocks, <=48 MiB limit, deeper pipeline.
        return 6 << 20, 48 << 20, 3
    if "v6" in kind:
        # 128 MiB VMEM, ~1.4 TB/s HBM: big blocks for DMA efficiency.
        return 12 << 20, 96 << 20, 2
    if "v5" in kind:
        # v5e/v5p: big VMEM but only a small scoped default -> must raise it.
        return 12 << 20, 64 << 20, 2
    # Unknown generation: stay conservative, keep the scoped default limit.
    return 4 << 20, None, 2


def _pick_batch_tile(B, row_bytes, block_budget):
    """Batch-tile rows: multiple of 8, under budget, >=2 grid steps if B>=16."""
    max_rows = max(8, (block_budget // max(row_bytes, 1)) // 8 * 8)
    bB = min(max_rows, _round_up(B, 8))
    if B >= 16:
        # Guarantee >=2 grid steps so (a) the "parallel" batch axis can shard
        # across both v7x TensorCores (each with its own HBM path) and (b) the
        # input/output DMA pipeline actually double-buffers.
        bB = min(bB, max(8, (B // 2) // 8 * 8))
    bB = max(8, bB)
    return bB, _round_up(B, bB)


def _block(shape, index_map, bufs=2):
    if bufs > 2:
        try:
            return pl.BlockSpec(shape, index_map, pipeline_mode=pl.Buffered(bufs))
        except Exception:
            pass  # older jax without pipeline_mode: fall back to default depth
    return pl.BlockSpec(shape, index_map)


def attention_2(inputs, input_lengths, attention_vector):
    """Pallas forward of Attention_2.

    inputs: (B, T, H) f32 or bf16; input_lengths: (B,); attention_vector: (H,).
    Returns (representations (B, H) f32, attentions (B, T) f32,
             weighted (B, T, H) in the input dtype).
    """
    io_dtype = jnp.bfloat16 if inputs.dtype == jnp.bfloat16 else jnp.float32
    inputs = inputs.astype(io_dtype)
    B, T, H = inputs.shape
    v = attention_vector.reshape(H).astype(jnp.float32)
    lens = input_lengths.reshape(B).astype(jnp.int32)

    block_budget, vmem_limit, bufs = _tpu_budgets()
    itemsize = jnp.dtype(io_dtype).itemsize
    row_bytes = T * H * itemsize
    bB, B_pad = _pick_batch_tile(B, row_bytes, block_budget)
    grid = (B_pad // bB,)

    if B_pad != B:
        # Pad batch so the tile never depends on B's divisor structure.
        inputs = jnp.pad(inputs, ((0, B_pad - B), (0, 0), (0, 0)))
        lens = jnp.pad(lens, (0, B_pad - B))      # padded rows have length 0
    lens2 = lens.reshape(B_pad, 1)

    cp_kwargs = dict(dimension_semantics=("parallel",))
    if vmem_limit is not None:
        cp_kwargs["vmem_limit_bytes"] = int(vmem_limit)
    compiler_params = pltpu.CompilerParams(**cp_kwargs)

    cost = pl.CostEstimate(
        flops=int(4 * B_pad * T * H),
        transcendentals=int(B_pad * T),
        bytes_accessed=int(2 * B_pad * T * H * itemsize
                           + 2 * B_pad * T * 4 + B_pad * H * 4),
    )

    # Lane-dense 2D path when H is not a multiple of 128 and the small helper
    # (kron) matrices stay tiny; otherwise the 3D path (already lane-dense).
    aux_bytes = T * H * (2 * T + H) * 4
    use_2d = (H % 128 != 0) and (aux_bytes <= (4 << 20))

    if use_2d:
        x2d = inputs.reshape(B_pad, T * H)        # row-major, no data movement
        eye_t = jnp.eye(T, dtype=jnp.float32)
        wlog = jnp.kron(eye_t, v.reshape(H, 1))                      # (T*H, T)
        expand = jnp.kron(eye_t, jnp.ones((1, H), jnp.float32))      # (T, T*H)
        reduce_m = jnp.kron(jnp.ones((T, 1), jnp.float32),
                            jnp.eye(H, dtype=jnp.float32))           # (T*H, H)

        rep, att, w2d = pl.pallas_call(
            attention2_kernel_2d,
            out_shape=(
                jax.ShapeDtypeStruct((B_pad, H), jnp.float32),
                jax.ShapeDtypeStruct((B_pad, T), jnp.float32),
                jax.ShapeDtypeStruct((B_pad, T * H), io_dtype),
            ),
            grid=grid,
            in_specs=[
                _block((bB, T * H), lambda i: (i, 0), bufs),
                pl.BlockSpec((T * H, T), lambda i: (0, 0)),
                pl.BlockSpec((T, T * H), lambda i: (0, 0)),
                pl.BlockSpec((T * H, H), lambda i: (0, 0)),
                pl.BlockSpec((bB, 1), lambda i: (i, 0)),
            ],
            out_specs=(
                pl.BlockSpec((bB, H), lambda i: (i, 0)),
                pl.BlockSpec((bB, T), lambda i: (i, 0)),
                _block((bB, T * H), lambda i: (i, 0), bufs),
            ),
            compiler_params=compiler_params,
            cost_estimate=cost,
        )(x2d, wlog, expand, reduce_m, lens2)
        weighted = w2d.reshape(B_pad, T, H)
    else:
        # TODO(synk): when H % 128 != 0 but T is so long that the kron helpers
        # would be large, a manual lane-dense repack would still pay off.
        rep, att, weighted = pl.pallas_call(
            attention2_kernel_3d,
            out_shape=(
                jax.ShapeDtypeStruct((B_pad, H), jnp.float32),
                jax.ShapeDtypeStruct((B_pad, T), jnp.float32),
                jax.ShapeDtypeStruct((B_pad, T, H), io_dtype),
            ),
            grid=grid,
            in_specs=[
                _block((bB, T, H), lambda i: (i, 0, 0), bufs),
                pl.BlockSpec((1, H), lambda i: (0, 0)),
                pl.BlockSpec((bB, 1), lambda i: (i, 0)),
            ],
            out_specs=(
                pl.BlockSpec((bB, H), lambda i: (i, 0)),
                pl.BlockSpec((bB, T), lambda i: (i, 0)),
                _block((bB, T, H), lambda i: (i, 0, 0), bufs),
            ),
            compiler_params=compiler_params,
            cost_estimate=cost,
        )(inputs, v.reshape(1, H), lens2)

    return rep[:B], att[:B], weighted[:B]


# ---------------------------------------------------------------------------
# Pure-JAX reference (mirrors the PyTorch forward exactly, global max)
# ---------------------------------------------------------------------------

def attention_2_ref(inputs, input_lengths, attention_vector):
    logits = inputs @ attention_vector                       # (B, T)
    unnorm = jnp.exp(logits - logits.max())
    B, T, _ = inputs.shape
    idx = jnp.arange(T)[None, :]
    mask = (idx < input_lengths[:, None]).astype(jnp.float32)
    masked = unnorm * mask
    att_sums = masked.sum(axis=1, keepdims=True)
    attentions = masked / att_sums
    weighted = inputs * attentions[:, :, None]
    representations = weighted.sum(axis=1)
    return representations, attentions, weighted


if __name__ == "__main__":
    # Small shapes consistent with the module: batch=2, seq=8, attention_size=32.
    B, T, H = 2, 8, 32
    key = jax.random.PRNGKey(0)
    k_x, k_v = jax.random.split(key)

    inputs = jax.random.normal(k_x, (B, T, H), dtype=jnp.float32)
    # Parameter(torch.FloatTensor(attention_size)) is uninitialized in the
    # module; initialize deterministically here.
    attention_vector = jax.random.normal(k_v, (H,), dtype=jnp.float32) * 0.1
    input_lengths = jnp.array([5, 8], dtype=jnp.int32)

    rep, att, weighted = attention_2(inputs, input_lengths, attention_vector)
    jax.block_until_ready((rep, att, weighted))

    rep_r, att_r, w_r = attention_2_ref(inputs, input_lengths, attention_vector)
    assert jnp.allclose(rep, rep_r, atol=1e-5, rtol=1e-5)
    assert jnp.allclose(att, att_r, atol=1e-5, rtol=1e-5)
    assert jnp.allclose(weighted, w_r, atol=1e-5, rtol=1e-5)

    print("KERNEL_OK")
</pallas_src>

<mosaic_0001>
module attributes {stable_mosaic.version = 11 : i64} {
  func.func @attention2_kernel_2d(%arg0: i32, %arg1: memref<8x256xf32, #tpu.memory_space<vmem>>, %arg2: memref<256x8xf32, #tpu.memory_space<vmem>>, %arg3: memref<8x256xf32, #tpu.memory_space<vmem>>, %arg4: memref<256x32xf32, #tpu.memory_space<vmem>>, %arg5: memref<8x1xi32, #tpu.memory_space<vmem>>, %arg6: memref<8x32xf32, #tpu.memory_space<vmem>>, %arg7: memref<8x8xf32, #tpu.memory_space<vmem>>, %arg8: memref<8x256xf32, #tpu.memory_space<vmem>>) attributes {dimension_semantics = [#tpu.dimension_semantics<parallel>], iteration_bounds = array<i64: 1>, scalar_prefetch = 0 : i64, scratch_operands = 0 : i64, tpu.core_type = #tpu.core_type<tc>, window_params = [{transform_indices = @transform_0, window_bounds = array<i64: 8, 256>}, {pipeline_mode = #tpu.pipeline_mode<synchronous>, transform_indices = @transform_1, window_bounds = array<i64: 256, 8>}, {pipeline_mode = #tpu.pipeline_mode<synchronous>, transform_indices = @transform_2, window_bounds = array<i64: 8, 256>}, {pipeline_mode = #tpu.pipeline_mode<synchronous>, transform_indices = @transform_3, window_bounds = array<i64: 256, 32>}, {transform_indices = @transform_4, window_bounds = array<i64: 8, 1>}, {transform_indices = @transform_5, window_bounds = array<i64: 8, 32>}, {transform_indices = @transform_6, window_bounds = array<i64: 8, 8>}, {transform_indices = @transform_7, window_bounds = array<i64: 8, 256>}]} {
    %c0 = arith.constant 0 : index
    %c0_0 = arith.constant 0 : index
    %0 = vector.load %arg1[%c0, %c0_0] : memref<8x256xf32, #tpu.memory_space<vmem>>, vector<8x256xf32>
    %c0_1 = arith.constant 0 : index
    %c0_2 = arith.constant 0 : index
    %1 = vector.load %arg5[%c0_1, %c0_2] : memref<8x1xi32, #tpu.memory_space<vmem>>, vector<8x1xi32>
    %c0_3 = arith.constant 0 : index
    %c0_4 = arith.constant 0 : index
    %2 = vector.load %arg2[%c0_3, %c0_4] : memref<256x8xf32, #tpu.memory_space<vmem>>, vector<256x8xf32>
    %cst = arith.constant dense<0.000000e+00> : vector<8x8xf32>
    %3 = tpu.matmul %0, %2, %cst {dimension_numbers = #tpu.dot_dimension_numbers<[1], [0], [0], [1], [0, 0, 1, 1], [], []>} : vector<8x256xf32>, vector<256x8xf32>, vector<8x8xf32> -> vector<8x8xf32>
    %4 = tpu.iota {dimensions = array<i32: 1>} : vector<8x8xi32>
    %5 = vector.broadcast %1 : vector<8x1xi32> to vector<8x8xi32>
    %6 = arith.cmpi slt, %4, %5 : vector<8x8xi32>
    %cst_5 = arith.constant 0xFF800000 : f32
    %7 = vector.broadcast %cst_5 : f32 to vector<8x8xf32>
    %8 = arith.select %6, %3, %7 : vector<8x8xi1>, vector<8x8xf32>
    %cst_6 = arith.constant dense<0xFF800000> : vector<8xf32>
    %9 = vector.multi_reduction <maximumf>, %8, %cst_6 [1] : vector<8x8xf32> to vector<8xf32>
    %10 = vector.shape_cast %9 : vector<8xf32> to vector<8x1xf32>
    %cst_7 = arith.constant 0xFF800000 : f32
    %11 = vector.broadcast %cst_7 : f32 to vector<8x1xf32>
    %12 = arith.cmpf oeq, %10, %11 : vector<8x1xf32>
    %cst_8 = arith.constant 0.000000e+00 : f32
    %13 = vector.broadcast %cst_8 : f32 to vector<8x1xf32>
    %14 = arith.select %12, %13, %10 : vector<8x1xi1>, vector<8x1xf32>
    %15 = vector.broadcast %14 : vector<8x1xf32> to vector<8x8xf32>
    %16 = arith.subf %8, %15 : vector<8x8xf32>
    %17 = math.exp %16 : vector<8x8xf32>
    %cst_9 = arith.constant dense<0.000000e+00> : vector<8xf32>
    %18 = vector.multi_reduction <add>, %17, %cst_9 [1] : vector<8x8xf32> to vector<8xf32>
    %19 = vector.shape_cast %18 : vector<8xf32> to vector<8x1xf32>
    %cst_10 = arith.constant 1.000000e-30 : f32
    %20 = vector.broadcast %cst_10 : f32 to vector<8x1xf32>
    %21 = arith.maximumf %19, %20 : vector<8x1xf32>
    %22 = vector.broadcast %21 : vector<8x1xf32> to vector<8x8xf32>
    %23 = arith.divf %17, %22 : vector<8x8xf32>
    %c0_11 = arith.constant 0 : index
    %c0_12 = arith.constant 0 : index
    %24 = vector.load %arg3[%c0_11, %c0_12] : memref<8x256xf32, #tpu.memory_space<vmem>>, vector<8x256xf32>
    %cst_13 = arith.constant dense<0.000000e+00> : vector<8x256xf32>
    %25 = tpu.matmul %23, %24, %cst_13 {dimension_numbers = #tpu.dot_dimension_numbers<[1], [0], [0], [1], [0, 0, 1, 1], [], []>} : vector<8x8xf32>, vector<8x256xf32>, vector<8x256xf32> -> vector<8x256xf32>
    %26 = arith.mulf %0, %25 : vector<8x256xf32>
    %c0_14 = arith.constant 0 : index
    %c0_15 = arith.constant 0 : index
    %27 = vector.load %arg4[%c0_14, %c0_15] : memref<256x32xf32, #tpu.memory_space<vmem>>, vector<256x32xf32>
    %cst_16 = arith.constant dense<0.000000e+00> : vector<8x32xf32>
    %28 = tpu.matmul %26, %27, %cst_16 {dimension_numbers = #tpu.dot_dimension_numbers<[1], [0], [0], [1], [0, 0, 1, 1], [], []>} : vector<8x256xf32>, vector<256x32xf32>, vector<8x32xf32> -> vector<8x32xf32>
    %c0_17 = arith.constant 0 : index
    %c0_18 = arith.constant 0 : index
    %29 = vector.load %arg6[%c0_17, %c0_18] : memref<8x32xf32, #tpu.memory_space<vmem>>, vector<8x32xf32>
    tpu.vector_store %arg6[%c0_17, %c0_18], %28 {strides = array<i32>} : memref<8x32xf32, #tpu.memory_space<vmem>>, vector<8x32xf32>,
    %c0_19 = arith.constant 0 : index
    %c0_20 = arith.constant 0 : index
    %30 = vector.load %arg7[%c0_19, %c0_20] : memref<8x8xf32, #tpu.memory_space<vmem>>, vector<8x8xf32>
    tpu.vector_store %arg7[%c0_19, %c0_20], %23 {strides = array<i32>} : memref<8x8xf32, #tpu.memory_space<vmem>>, vector<8x8xf32>,
    %c0_21 = arith.constant 0 : index
    %c0_22 = arith.constant 0 : index
    %31 = vector.load %arg8[%c0_21, %c0_22] : memref<8x256xf32, #tpu.memory_space<vmem>>, vector<8x256xf32>
    tpu.vector_store %arg8[%c0_21, %c0_22], %26 {strides = array<i32>} : memref<8x256xf32, #tpu.memory_space<vmem>>, vector<8x256xf32>,
    return
  }
  func.func @transform_0(%arg0: i32) -> (i32, i32) {
    %c0_i32 = arith.constant 0 : i32
    %c0_i32_0 = arith.constant 0 : i32
    return %arg0, %c0_i32 : i32, i32
  }
  func.func @transform_1(%arg0: i32) -> (i32, i32) {
    %c0_i32 = arith.constant 0 : i32
    %c0_i32_0 = arith.constant 0 : i32
    %c0_i32_1 = arith.constant 0 : i32
    return %c0_i32, %c0_i32_0 : i32, i32
  }
  func.func @transform_2(%arg0: i32) -> (i32, i32) {
    %c0_i32 = arith.constant 0 : i32
    %c0_i32_0 = arith.constant 0 : i32
    %c0_i32_1 = arith.constant 0 : i32
    return %c0_i32, %c0_i32_0 : i32, i32
  }
  func.func @transform_3(%arg0: i32) -> (i32, i32) {
    %c0_i32 = arith.constant 0 : i32
    %c0_i32_0 = arith.constant 0 : i32
    %c0_i32_1 = arith.constant 0 : i32
    return %c0_i32, %c0_i32_0 : i32, i32
  }
  func.func @transform_4(%arg0: i32) -> (i32, i32) {
    %c0_i32 = arith.constant 0 : i32
    %c0_i32_0 = arith.constant 0 : i32
    return %arg0, %c0_i32 : i32, i32
  }
  func.func @transform_5(%arg0: i32) -> (i32, i32) {
    %c0_i32 = arith.constant 0 : i32
    %c0_i32_0 = arith.constant 0 : i32
    return %arg0, %c0_i32 : i32, i32
  }
  func.func @transform_6(%arg0: i32) -> (i32, i32) {
    %c0_i32 = arith.constant 0 : i32
    %c0_i32_0 = arith.constant 0 : i32
    return %arg0, %c0_i32 : i32, i32
  }
  func.func @transform_7(%arg0: i32) -> (i32, i32) {
    %c0_i32 = arith.constant 0 : i32
    %c0_i32_0 = arith.constant 0 : i32
    return %arg0, %c0_i32 : i32, i32
  }
}

</mosaic_0001>

<llo_original>
// kernel: tpu_custom_call.1
$region0: #{tpu_custom_call.1}
  #allocation0 [shape = 'u32[]', space=smem, size = 0x4, offset = 0x4, fixed_abs, tag = 'smem constant byte address 0x4 - core index']
  #allocation1 [shape = 'u32[144,128]{1,0:T(1,128)}', space=vmem, size = 0x12000, scoped, tag = 'internal scratch']
  %s0 = inlined_call_operand.vmem [shape: f32[8,256], index: 0, kind: input, shape index: {}]
  %s1 = inlined_call_operand.vmem [shape: f32[256,8], index: 1, kind: input, shape index: {}]
  %s2 = inlined_call_operand.vmem [shape: f32[8,256], index: 2, kind: input, shape index: {}]
  %s3 = inlined_call_operand.vmem [shape: f32[256,32], index: 3, kind: input, shape index: {}]
  %s4 = inlined_call_operand.vmem [shape: s32[8,1], index: 4, kind: input, shape index: {}]
  %s5 = inlined_call_operand.hbm [shape: f32[8,32], index: 5, kind: output, shape index: {0}]
  %s6 = inlined_call_operand.hbm [shape: f32[8,8], index: 6, kind: output, shape index: {1}]
  %s7 = inlined_call_operand.hbm [shape: f32[8,256], index: 7, kind: output, shape index: {2}]
  %8 = xla_tuple %s5, %s6, %s7
  %s9 = sld [smem:[#allocation0]]
  $region46: #{tpu_custom_call.1} parent=0
    _
  %s11 = ssub.s32 1, %s9
  %s12 = scalar_select 0, %s11, %s9
  $region1: #{tpu_custom_call.1} parent=0
    #allocation2 [shape = 'u8[4096]{0}', space=vmem, size = 0x1000, scoped, tag = 'output window, operand 0, single buffered']
    #allocation3 [shape = 's32[1]{0}', space=sflag, size = 0x4, scoped, tag = 'scoped memory for tpu_custom_call.1']
    #allocation4 [shape = 'u8[4096]{0}', space=vmem, size = 0x1000, scoped, tag = 'output window, operand 1, single buffered']
    #allocation5 [shape = 's32[1]{0}', space=sflag, size = 0x4, scoped, tag = 'scoped memory for tpu_custom_call.1']
    #allocation6 [shape = 'u8[8192]{0}', space=vmem, size = 0x2000, scoped, tag = 'output window, operand 2, single buffered']
    %13 = vsyncpa [#allocation3], 0
    %14 = vsyncpa [#allocation5], 0
    // Predicated region
    $region2: #{tpu_custom_call.1} parent=1 // pred_check
      _
    $region3: #{tpu_custom_call.1} parent=1 // pred_check_branch
      %16 = sbr.rel (0) target = $region5
    $region4: #{tpu_custom_call.1} parent=1 // pred_region
      _
    $region5: #{tpu_custom_call.1} parent=1 // pred_fallthru
      _
    // Predicated region
    $region6: #{tpu_custom_call.1} parent=1 // pred_check
      _
    $region7: #{tpu_custom_call.1} parent=1 // pred_check_branch
      %18 = sbr.rel (0) target = $region9
    $region8: #{tpu_custom_call.1} parent=1 // pred_region
      _
    $region9: #{tpu_custom_call.1} parent=1 // pred_fallthru
      _
    // Predicated region
    $region10: #{tpu_custom_call.1} parent=1 // pred_check
      _
    $region11: #{tpu_custom_call.1} parent=1 // pred_check_branch
      %20 = sbr.rel (0) target = $region13
    $region12: #{tpu_custom_call.1} parent=1 // pred_region
      _
    $region13: #{tpu_custom_call.1} parent=1 // pred_fallthru
      _
    // Predicated region
    $region14: #{tpu_custom_call.1} parent=1 // pred_check
      _
    $region15: #{tpu_custom_call.1} parent=1 // pred_check_branch
      %22 = sbr.rel (0) target = $region17
    $region16: #{tpu_custom_call.1} parent=1 // pred_region
      _
    $region17: #{tpu_custom_call.1} parent=1 // pred_fallthru
      _
    // Predicated region
    $region18: #{tpu_custom_call.1} parent=1 // pred_check
      _
    $region19: #{tpu_custom_call.1} parent=1 // pred_check_branch
      %24 = sbr.rel (0) target = $region21
    $region20: #{tpu_custom_call.1} parent=1 // pred_region
      _
    $region21: #{tpu_custom_call.1} parent=1 // pred_fallthru
      _
    %v25 = vld [vmem:[%s0] sm:$0xff]
    %v26 = vld [vmem:[%s0 + $0x8] sm:$0xff]
    %v27 = vld [vmem:[%s4] sm:$0xff]
    %v28 = vld [vmem:[%s1] sm:$0xff]
    %v29 = vld [vmem:[%s1 + $0x8] sm:$0xff]
    %v30 = vld [vmem:[%s1 + $0x10] sm:$0xff]
    %v31 = vld [vmem:[%s1 + $0x18] sm:$0xff]
    %v32 = vld [vmem:[%s1 + $0x20] sm:$0xff]
    %v33 = vld [vmem:[%s1 + $0x28] sm:$0xff]
    %v34 = vld [vmem:[%s1 + $0x30] sm:$0xff]
    %v35 = vld [vmem:[%s1 + $0x38] sm:$0xff]
    %v36 = vld [vmem:[%s1 + $0x40] sm:$0xff]
    %v37 = vld [vmem:[%s1 + $0x48] sm:$0xff]
    %v38 = vld [vmem:[%s1 + $0x50] sm:$0xff]
    %v39 = vld [vmem:[%s1 + $0x58] sm:$0xff]
    %v40 = vld [vmem:[%s1 + $0x60] sm:$0xff]
    %v41 = vld [vmem:[%s1 + $0x68] sm:$0xff]
    %v42 = vld [vmem:[%s1 + $0x70] sm:$0xff]
    %v43 = vld [vmem:[%s1 + $0x78] sm:$0xff]
    %v44 = vld [vmem:[%s1 + $0x80] sm:$0xff]
    %v45 = vld [vmem:[%s1 + $0x88] sm:$0xff]
    %v46 = vld [vmem:[%s1 + $0x90] sm:$0xff]
    %v47 = vld [vmem:[%s1 + $0x98] sm:$0xff]
    %v48 = vld [vmem:[%s1 + $0xa0] sm:$0xff]
    %v49 = vld [vmem:[%s1 + $0xa8] sm:$0xff]
    %v50 = vld [vmem:[%s1 + $0xb0] sm:$0xff]
    %v51 = vld [vmem:[%s1 + $0xb8] sm:$0xff]
    %v52 = vld [vmem:[%s1 + $0xc0] sm:$0xff]
    %v53 = vld [vmem:[%s1 + $0xc8] sm:$0xff]
    %v54 = vld [vmem:[%s1 + $0xd0] sm:$0xff]
    %v55 = vld [vmem:[%s1 + $0xd8] sm:$0xff]
    %v56 = vld [vmem:[%s1 + $0xe0] sm:$0xff]
    %v57 = vld [vmem:[%s1 + $0xe8] sm:$0xff]
    %v58 = vld [vmem:[%s1 + $0xf0] sm:$0xff]
    %v59 = vld [vmem:[%s1 + $0xf8] sm:$0xff]
    %60 = vmatprep.subr.mxu0 0.0
    %61 = vmatpush1.msra.mxu0 %v43
    %62 = vmatprep.subr.mxu0 0.0
    %63 = vmatpush1.msra.mxu0 %v42
    %64 = vmatprep.subr.mxu0 0.0
    %65 = vmatpush1.msra.mxu0 %v41
    %66 = vmatprep.subr.mxu0 0.0
    %67 = vmatpush1.msra.mxu0 %v40
    %68 = vmatprep.subr.mxu0 0.0
    %69 = vmatpush1.msra.mxu0 %v39
    %70 = vmatprep.subr.mxu0 0.0
    %71 = vmatpush1.msra.mxu0 %v38
    %72 = vmatprep.subr.mxu0 0.0
    %73 = vmatpush1.msra.mxu0 %v37
    %74 = vmatprep.subr.mxu0 0.0
    %75 = vmatpush1.msra.mxu0 %v36
    %76 = vmatprep.subr.mxu0 0.0
    %77 = vmatpush1.msra.mxu0 %v35
    %78 = vmatprep.subr.mxu0 0.0
    %79 = vmatpush1.msra.mxu0 %v34
    %80 = vmatprep.subr.mxu0 0.0
    %81 = vmatpush1.msra.mxu0 %v33
    %82 = vmatprep.subr.mxu0 0.0
    %83 = vmatpush1.msra.mxu0 %v32
    %84 = vmatprep.subr.mxu0 0.0
    %85 = vmatpush1.msra.mxu0 %v31
    %86 = vmatprep.subr.mxu0 0.0
    %87 = vmatpush1.msra.mxu0 %v30
    %88 = vmatprep.subr.mxu0 0.0
    %89 = vmatpush1.msra.mxu0 %v29
    %90 = vmatprep.subr.mxu0 0.0
    %91 = vmatpush1.msra.mxu0 %v28
    %92 = vmatprep.subr.mxu0 0.0
    %93 = vmatpush2.msra.mxu0 %v59
    %94 = vmatprep.subr.mxu0 0.0
    %95 = vmatpush2.msra.mxu0 %v58
    %96 = vmatprep.subr.mxu0 0.0
    %97 = vmatpush2.msra.mxu0 %v57
    %98 = vmatprep.subr.mxu0 0.0
    %99 = vmatpush2.msra.mxu0 %v56
    %100 = vmatprep.subr.mxu0 0.0
    %101 = vmatpush2.msra.mxu0 %v55
    %102 = vmatprep.subr.mxu0 0.0
    %103 = vmatpush2.msra.mxu0 %v54
    %104 = vmatprep.subr.mxu0 0.0
    %105 = vmatpush2.msra.mxu0 %v53
    %106 = vmatprep.subr.mxu0 0.0
    %107 = vmatpush2.msra.mxu0 %v52
    %108 = vmatprep.subr.mxu0 0.0
    %109 = vmatpush2.msra.mxu0 %v51
    %110 = vmatprep.subr.mxu0 0.0
    %111 = vmatpush2.msra.mxu0 %v50
    %112 = vmatprep.subr.mxu0 0.0
    %113 = vmatpush2.msra.mxu0 %v49
    %114 = vmatprep.subr.mxu0 0.0
    %115 = vmatpush2.msra.mxu0 %v48
    %116 = vmatprep.subr.mxu0 0.0
    %117 = vmatpush2.msra.mxu0 %v47
    %118 = vmatprep.subr.mxu0 0.0
    %119 = vmatpush2.msra.mxu0 %v46
    %120 = vmatprep.subr.mxu0 0.0
    %121 = vmatpush2.msra.mxu0 %v45
    %122 = vmatprep.subr.mxu0 0.0
    %123 = vmatpush2.msra.mxu0 %v44
    %124 = vmatprep.mubr.f32.mxu0 %v26
    %125 = vmatmul.mubr.f32.gmra.mxu0 %v25
    %v126 = vpop.f32.mrf.mxu0
    %v127 = vadd.f32 0.0, %v126
    %v128 = vpop.f32.mrf.mxu0
    %129 = vdwg.mxu0
    %v130 = vlaneseq
    %v131 = vand.u32 %v130, 127
    %132 = vset.pattern.permute.xlu0 0
    %133 = vperm.xlu0 %132, %v27
    %v134 = vpop.permute.xlu0 %133
    %vm135 = vcmp.lt.s32.totalorder %v131, %v134
    %v136 = vsel %vm135, %v127, -inf
    %vm137 = vcmask 64512
    %v138 = vsel %vm137, %v136, -inf
    %139 = vmax.xlane.f32.xlu0 %v138
    %v140 = vpop.xlane.xlu0 %139
    %vm141 = vcmp.eq.f32.partialorder %v140, -inf
    %v142 = vsel %vm141, 0.0, %v140
    %v143 = vsub.f32 %v136, %v142
    %v144 = vmul.f32 %v143, 1.442695
    %v145 = vpow.pop %v144
    %v146 = vsel %vm137, %v145, 0.0
    %147 = vadd.xlane.f32.xlu0 %v146
    %v148 = vpop.xlane.xlu0 %147
    %v149 = vmax.f32 %v148, 1e-30
    %v150 = vrcp.pop %v149
    %v151 = vmul.f32 %v145, %v150
    %v152 = vld [vmem:[%s2] sm:$0xff]
    %v153 = vld [vmem:[%s2 + $0x8] sm:$0xff]
    %v155 = vsel %vm137, %v151, 0
    %157 = vmatprep.subr.mxu0 0.0
    %158 = vmatpush1.msra.mxu0 0.0
    %159 = vmatprep.subr.mxu0 0.0
    %160 = vmatpush1.msra.mxu0 0.0
    %161 = vmatprep.subr.mxu0 0.0
    %162 = vmatpush1.msra.mxu0 0.0
    %163 = vmatprep.subr.mxu0 0.0
    %164 = vmatpush1.msra.mxu0 0.0
    %165 = vmatprep.subr.mxu0 0.0
    %166 = vmatpush1.msra.mxu0 0.0
    %167 = vmatprep.subr.mxu0 0.0
    %168 = vmatpush1.msra.mxu0 0.0
    %169 = vmatprep.subr.mxu0 0.0
    %170 = vmatpush1.msra.mxu0 0.0
    %171 = vmatprep.subr.mxu0 0.0
    %172 = vmatpush1.msra.mxu0 0.0
    %173 = vmatprep.subr.mxu0 0.0
    %174 = vmatpush1.msra.mxu0 0.0
    %175 = vmatprep.subr.mxu0 0.0
    %176 = vmatpush1.msra.mxu0 0.0
    %177 = vmatprep.subr.mxu0 0.0
    %178 = vmatpush1.msra.mxu0 0.0
    %179 = vmatprep.subr.mxu0 0.0
    %180 = vmatpush1.msra.mxu0 0.0
    %181 = vmatprep.subr.mxu0 0.0
    %182 = vmatpush1.msra.mxu0 0.0
    %183 = vmatprep.subr.mxu0 0.0
    %184 = vmatpush1.msra.mxu0 0.0
    %185 = vmatprep.subr.mxu0 0.0
    %186 = vmatpush1.msra.mxu0 0.0
    %187 = vmatprep.subr.mxu0 %v153
    %188 = vmatpush1.msra.mxu0 %v152
    %189 = vmatprep.subr.mxu0 0.0
    %190 = vmatpush2.msra.mxu0 0.0
    %191 = vmatprep.subr.mxu0 0.0
    %192 = vmatpush2.msra.mxu0 0.0
    %193 = vmatprep.subr.mxu0 0.0
    %194 = vmatpush2.msra.mxu0 0.0
    %195 = vmatprep.subr.mxu0 0.0
    %196 = vmatpush2.msra.mxu0 0.0
    %197 = vmatprep.subr.mxu0 0.0
    %198 = vmatpush2.msra.mxu0 0.0
    %199 = vmatprep.subr.mxu0 0.0
    %200 = vmatpush2.msra.mxu0 0.0
    %201 = vmatprep.subr.mxu0 0.0
    %202 = vmatpush2.msra.mxu0 0.0
    %203 = vmatprep.subr.mxu0 0.0
    %204 = vmatpush2.msra.mxu0 0.0
    %205 = vmatprep.subr.mxu0 0.0
    %206 = vmatpush2.msra.mxu0 0.0
    %207 = vmatprep.subr.mxu0 0.0
    %208 = vmatpush2.msra.mxu0 0.0
    %209 = vmatprep.subr.mxu0 0.0
    %210 = vmatpush2.msra.mxu0 0.0
    %211 = vmatprep.subr.mxu0 0.0
    %212 = vmatpush2.msra.mxu0 0.0
    %213 = vmatprep.subr.mxu0 0.0
    %214 = vmatpush2.msra.mxu0 0.0
    %215 = vmatprep.subr.mxu0 0.0
    %216 = vmatpush2.msra.mxu0 0.0
    %217 = vmatprep.subr.mxu0 0.0
    %218 = vmatpush2.msra.mxu0 0.0
    %219 = vmatprep.subr.mxu0 0.0
    %220 = vmatpush2.msra.mxu0 0.0
    %221 = vmatprep.mubr.f32.mxu0 0.0
    %222 = vmatmul.mubr.f32.gmra.mxu0 %v155
    %v223 = vpop.f32.mrf.mxu0
    %v224 = vadd.f32 0.0, %v223
    %v225 = vpop.f32.mrf.mxu0
    %v226 = vadd.f32 0.0, %v225
    %227 = vdwg.mxu0
    %v228 = vmul.f32 %v25, %v224
    %v229 = vmul.f32 %v26, %v226
    %v230 = vld [vmem:[%s3] sm:$0xff]
    %v231 = vld [vmem:[%s3 + $0x8] sm:$0xff]
    %v232 = vld [vmem:[%s3 + $0x10] sm:$0xff]
    %v233 = vld [vmem:[%s3 + $0x18] sm:$0xff]
    %v234 = vld [vmem:[%s3 + $0x20] sm:$0xff]
    %v235 = vld [vmem:[%s3 + $0x28] sm:$0xff]
    %v236 = vld [vmem:[%s3 + $0x30] sm:$0xff]
    %v237 = vld [vmem:[%s3 + $0x38] sm:$0xff]
    %v238 = vld [vmem:[%s3 + $0x40] sm:$0xff]
    %v239 = vld [vmem:[%s3 + $0x48] sm:$0xff]
    %v240 = vld [vmem:[%s3 + $0x50] sm:$0xff]
    %v241 = vld [vmem:[%s3 + $0x58] sm:$0xff]
    %v242 = vld [vmem:[%s3 + $0x60] sm:$0xff]
    %v243 = vld [vmem:[%s3 + $0x68] sm:$0xff]
    %v244 = vld [vmem:[%s3 + $0x70] sm:$0xff]
    %v245 = vld [vmem:[%s3 + $0x78] sm:$0xff]
    %v246 = vld [vmem:[%s3 + $0x80] sm:$0xff]
    %v247 = vld [vmem:[%s3 + $0x88] sm:$0xff]
    %v248 = vld [vmem:[%s3 + $0x90] sm:$0xff]
    %v249 = vld [vmem:[%s3 + $0x98] sm:$0xff]
    %v250 = vld [vmem:[%s3 + $0xa0] sm:$0xff]
    %v251 = vld [vmem:[%s3 + $0xa8] sm:$0xff]
    %v252 = vld [vmem:[%s3 + $0xb0] sm:$0xff]
    %v253 = vld [vmem:[%s3 + $0xb8] sm:$0xff]
    %v254 = vld [vmem:[%s3 + $0xc0] sm:$0xff]
    %v255 = vld [vmem:[%s3 + $0xc8] sm:$0xff]
    %v256 = vld [vmem:[%s3 + $0xd0] sm:$0xff]
    %v257 = vld [vmem:[%s3 + $0xd8] sm:$0xff]
    %v258 = vld [vmem:[%s3 + $0xe0] sm:$0xff]
    %v259 = vld [vmem:[%s3 + $0xe8] sm:$0xff]
    %v260 = vld [vmem:[%s3 + $0xf0] sm:$0xff]
    %v261 = vld [vmem:[%s3 + $0xf8] sm:$0xff]
    %262 = vmatprep.subr.mxu0 0.0
    %263 = vmatpush1.msra.mxu0 %v245
    %264 = vmatprep.subr.mxu0 0.0
    %265 = vmatpush1.msra.mxu0 %v244
    %266 = vmatprep.subr.mxu0 0.0
    %267 = vmatpush1.msra.mxu0 %v243
    %268 = vmatprep.subr.mxu0 0.0
    %269 = vmatpush1.msra.mxu0 %v242
    %270 = vmatprep.subr.mxu0 0.0
    %271 = vmatpush1.msra.mxu0 %v241
    %272 = vmatprep.subr.mxu0 0.0
    %273 = vmatpush1.msra.mxu0 %v240
    %274 = vmatprep.subr.mxu0 0.0
    %275 = vmatpush1.msra.mxu0 %v239
    %276 = vmatprep.subr.mxu0 0.0
    %277 = vmatpush1.msra.mxu0 %v238
    %278 = vmatprep.subr.mxu0 0.0
    %279 = vmatpush1.msra.mxu0 %v237
    %280 = vmatprep.subr.mxu0 0.0
    %281 = vmatpush1.msra.mxu0 %v236
    %282 = vmatprep.subr.mxu0 0.0
    %283 = vmatpush1.msra.mxu0 %v235
    %284 = vmatprep.subr.mxu0 0.0
    %285 = vmatpush1.msra.mxu0 %v234
    %286 = vmatprep.subr.mxu0 0.0
    %287 = vmatpush1.msra.mxu0 %v233
    %288 = vmatprep.subr.mxu0 0.0
    %289 = vmatpush1.msra.mxu0 %v232
    %290 = vmatprep.subr.mxu0 0.0
    %291 = vmatpush1.msra.mxu0 %v231
    %292 = vmatprep.subr.mxu0 0.0
    %293 = vmatpush1.msra.mxu0 %v230
    %294 = vmatprep.subr.mxu0 0.0
    %295 = vmatpush2.msra.mxu0 %v261
    %296 = vmatprep.subr.mxu0 0.0
    %297 = vmatpush2.msra.mxu0 %v260
    %298 = vmatprep.subr.mxu0 0.0
    %299 = vmatpush2.msra.mxu0 %v259
    %300 = vmatprep.subr.mxu0 0.0
    %301 = vmatpush2.msra.mxu0 %v258
    %302 = vmatprep.subr.mxu0 0.0
    %303 = vmatpush2.msra.mxu0 %v257
    %304 = vmatprep.subr.mxu0 0.0
    %305 = vmatpush2.msra.mxu0 %v256
    %306 = vmatprep.subr.mxu0 0.0
    %307 = vmatpush2.msra.mxu0 %v255
    %308 = vmatprep.subr.mxu0 0.0
    %309 = vmatpush2.msra.mxu0 %v254
    %310 = vmatprep.subr.mxu0 0.0
    %311 = vmatpush2.msra.mxu0 %v253
    %312 = vmatprep.subr.mxu0 0.0
    %313 = vmatpush2.msra.mxu0 %v252
    %314 = vmatprep.subr.mxu0 0.0
    %315 = vmatpush2.msra.mxu0 %v251
    %316 = vmatprep.subr.mxu0 0.0
    %317 = vmatpush2.msra.mxu0 %v250
    %318 = vmatprep.subr.mxu0 0.0
    %319 = vmatpush2.msra.mxu0 %v249
    %320 = vmatprep.subr.mxu0 0.0
    %321 = vmatpush2.msra.mxu0 %v248
    %322 = vmatprep.subr.mxu0 0.0
    %323 = vmatpush2.msra.mxu0 %v247
    %324 = vmatprep.subr.mxu0 0.0
    %325 = vmatpush2.msra.mxu0 %v246
    %326 = vmatprep.mubr.f32.mxu0 %v229
    %327 = vmatmul.mubr.f32.gmra.mxu0 %v228
    %v328 = vpop.f32.mrf.mxu0
    %v329 = vadd.f32 0.0, %v328
    %v330 = vpop.f32.mrf.mxu0
    %331 = vdwg.mxu0
    %vm332 = vcmask 261120
    %333 = vst.msk [vmem:[#allocation2] sm:$0xff] %vm332, %v329
    %334 = vst.msk [vmem:[#allocation4] sm:$0xff] %vm137, %v151
    %335 = vst [vmem:[#allocation6] sm:$0xff] %v228
    %336 = vst [vmem:[#allocation6 + $0x8] sm:$0xff] %v229
    // Predicated region
    $region22: #{tpu_custom_call.1} parent=1 // pred_check
      _
    $region23: #{tpu_custom_call.1} parent=1 // pred_check_branch
      %338 = sbr.rel (0) target = $region25
    $region24: #{tpu_custom_call.1} parent=1 // pred_region
      %s340 = ssub.s32 128, 128
      %341 = vsyncadd [#allocation3], %s340
      %s343 = sshll.u32 [#allocation2], 4
      %s344 = int_to_ptr.vmem [resolvable:$true] %s343
      %346 = dma.vmem_to_hbm [thread:$0]  %s344, 128, %s5, [#allocation3]
    $region25: #{tpu_custom_call.1} parent=1 // pred_fallthru
      _
    // Predicated region
    $region26: #{tpu_custom_call.1} parent=1 // pred_check
      _
    $region27: #{tpu_custom_call.1} parent=1 // pred_check_branch
      %348 = sbr.rel (0) target = $region29
    $region28: #{tpu_custom_call.1} parent=1 // pred_region
      %s350 = ssub.s32 128, 128
      %351 = vsyncadd [#allocation5], %s350
      %s353 = sshll.u32 [#allocation4], 4
      %s354 = int_to_ptr.vmem [resolvable:$true] %s353
      %356 = dma.vmem_to_hbm [thread:$0]  %s354, 128, %s6, [#allocation5]
    $region29: #{tpu_custom_call.1} parent=1 // pred_fallthru
      _
    // Predicated region
    $region30: #{tpu_custom_call.1} parent=1 // pred_check
      _
    $region31: #{tpu_custom_call.1} parent=1 // pred_check_branch
      %358 = sbr.rel (0) target = $region33
    $region32: #{tpu_custom_call.1} parent=1 // pred_region
      %s360 = ssub.s32 256, 256
      %361 = vsyncadd [#allocation5], %s360
      %s363 = sshll.u32 [#allocation6], 4
      %s364 = int_to_ptr.vmem [resolvable:$true] %s363
      %366 = dma.vmem_to_hbm [thread:$0]  %s364, 256, %s7, [#allocation5]
    $region33: #{tpu_custom_call.1} parent=1 // pred_fallthru
      _
    // Predicated region
    $region34: #{tpu_custom_call.1} parent=1 // pred_check
      _
    $region35: #{tpu_custom_call.1} parent=1 // pred_check_branch
      %368 = sbr.rel (0) target = $region37
    $region36: #{tpu_custom_call.1} parent=1 // pred_region
      %369 = dma.done [#allocation3], 128
    $region37: #{tpu_custom_call.1} parent=1 // pred_fallthru
      _
    // Predicated region
    $region38: #{tpu_custom_call.1} parent=1 // pred_check
      _
    $region39: #{tpu_custom_call.1} parent=1 // pred_check_branch
      %371 = sbr.rel (0) target = $region41
    $region40: #{tpu_custom_call.1} parent=1 // pred_region
      %372 = dma.done [#allocation5], 128
    $region41: #{tpu_custom_call.1} parent=1 // pred_fallthru
      _
    // Predicated region
    $region42: #{tpu_custom_call.1} parent=1 // pred_check
      _
    $region43: #{tpu_custom_call.1} parent=1 // pred_check_branch
      %374 = sbr.rel (0) target = $region45
    $region44: #{tpu_custom_call.1} parent=1 // pred_region
      %375 = dma.done [#allocation5], 256
    $region45: #{tpu_custom_call.1} parent=1 // pred_fallthru
      _
    %376 = vsyncpa [#allocation3], 1
    %377 = vsyncpa [#allocation5], 1

</llo_original>
